<compile_context>
chip_gen: v7x
topology: tpu7x:2x2x1
jax: 0.10.0
libtpu: 0.0.40
codegen_flags: <defaults>
</compile_context>

<pallas_src>
import math

import jax
import jax.numpy as jnp
from jax.experimental import pallas as pl
from jax.experimental.pallas import tpu as pltpu

ALPHA = 0.2                 # LeakyReLU negative slope
CONCAT = True               # apply ELU at the end
NEG_INF = -9e15             # matches the PyTorch reference's zero_vec constant
MXU_DTYPE = jnp.bfloat16    # bf16 feeds for the MXU matmuls (f32 accumulation)


def _round_up(x, m):
    return ((x + m - 1) // m) * m


def _pick_tile(n, mult, max_tile, *, min_tile=None, min_tiles=1):
    """Tile size (multiple of `mult`, <= max_tile) minimizing round-up padding of `n`,
    preferring (a) at least `min_tiles` grid steps (megacore) and (b) fewer steps."""
    min_tile = mult if min_tile is None else min_tile
    hi = min(max_tile, _round_up(n, mult))
    lo = min(min_tile, hi)
    best_t, best_key = None, None
    for t in range(lo, hi + 1, mult):
        padded = _round_up(n, t)
        tiles = padded // t
        key = (0 if tiles >= min_tiles else 1, padded, tiles)
        if best_key is None or key < best_key:
            best_t, best_key = t, key
    return best_t


def _gat_kernel(e1_ref, e2_ref, adj_ref, whk_ref, out_ref, m_ref, acc_ref):
    """grid = (row_tiles, key_tiles). Flash-style online softmax over the key axis."""
    k = pl.program_id(1)

    @pl.when(k == 0)
    def _init():
        m_ref[...] = jnp.full_like(m_ref, -jnp.inf)
        acc_ref[...] = jnp.zeros_like(acc_ref)

    # e_ij = LeakyReLU(Wh_i.a1 + Wh_j.a2); e1 is a column, e2 a lane-major row,
    # so no transpose / relayout is needed per step.
    e = e1_ref[...] + e2_ref[...]                       # (tq, tk), f32
    e = jnp.maximum(e, ALPHA * e)                       # LeakyReLU (0 < ALPHA < 1)

    # mask non-edges (adj streamed as int8; sign-extend + int compare, no float cvt)
    edge = adj_ref[...].astype(jnp.int32) > 0
    masked = jnp.where(edge, e, NEG_INF)

    # online softmax over the key axis; the row-sum rides in whk's trailing ones column,
    # so the MXU accumulates numerator and denominator together.
    m_prev = m_ref[...]
    m_new = jnp.maximum(m_prev, jnp.max(masked, axis=1, keepdims=True))
    scale = jnp.exp(m_prev - m_new)
    p = jnp.exp(masked - m_new)
    acc_ref[...] = scale * acc_ref[...] + jnp.dot(
        p.astype(MXU_DTYPE), whk_ref[...], preferred_element_type=jnp.float32)
    m_ref[...] = m_new

    @pl.when(k == pl.num_programs(1) - 1)
    def _finalize():
        acc = acc_ref[...]
        # last acc column = running softmax denominator; exact reciprocal (once/tile)
        inv_l = pl.reciprocal(acc[:, -1:], approx=False)
        hp = acc * inv_l                                # dropout(training=False) = id
        if CONCAT:
            hp = jnp.where(hp > 0.0, hp, jnp.exp(hp) - 1.0)   # ELU
        out_ref[...] = hp.astype(out_ref.dtype)


def gat_forward(h, adj, W, a):
    """GAT forward: h (N, F_in) f32, adj (N, N), W (F_in, F_out), a (2*F_out, 1)."""
    N, f_in = h.shape
    f_out = W.shape[1]
    assert a.shape == (2 * f_out, 1)

    # ---- hoisted projection (computed once, outside the attention loop) -----
    Wh = jnp.dot(h.astype(MXU_DTYPE), W.astype(MXU_DTYPE),
                 preferred_element_type=jnp.float32)          # (N, F_out), f32
    e1 = Wh @ a[:f_out, :]                                    # (N, 1), f32
    e2 = (Wh @ a[f_out:, :]).reshape(1, N)                    # (1, N), lane-major f32

    # ---- tiling / padding (zero padding never changes the math) -------------
    f_out_p = _round_up(f_out + 1, 128)      # >=1 spare lane-dense column for ones/sum
    tq = _pick_tile(N, 32, 256, min_tile=128, min_tiles=2)    # >=2 row tiles (v7x 2-TC)
    tk = _pick_tile(N, 128, 1024)            # key axis may fit in a single tile
    n_q = _round_up(N, tq)
    n_k = _round_up(N, tk)
    grid = (n_q // tq, n_k // tk)

    e1_p = jnp.zeros((n_q, 1), jnp.float32).at[:N, :].set(e1)
    e2_p = jnp.zeros((1, n_k), jnp.float32).at[:, :N].set(e2)
    adj_i8 = jnp.zeros((n_q, n_k), jnp.int8).at[:N, :N].set(
        (adj > 0).astype(jnp.int8))                           # 4x less HBM than f32
    whk = jnp.zeros((n_k, f_out_p), MXU_DTYPE)
    whk = whk.at[:N, :f_out].set(Wh.astype(MXU_DTYPE))
    whk = whk.at[:N, f_out_p - 1].set(1.0)   # ones column -> softmax denominator
    # NOTE: padded key rows carry zero Wh and a zero ones-column weight, so even a row
    # with no edges reduces to the reference's uniform-over-N behaviour.

    # ---- VMEM budget & cost hints --------------------------------------------
    vmem_bytes = (2 * (tq * 4 + tk * 4                 # e1 / e2 blocks (double-buffered)
                       + tq * tk                        # adj block (int8)
                       + tk * f_out_p * 2               # Wh|1 block (bf16)
                       + tq * f_out_p * 4)              # output block (f32)
                  + tq * 4 + tq * f_out_p * 4)          # scratch: m, acc
    vmem_limit = int(min(max(4 * vmem_bytes, 16 * 1024 * 1024), 56 * 1024 * 1024))

    cost = pl.CostEstimate(
        flops=int(2 * n_q * n_k * f_out_p + 10 * n_q * n_k),
        transcendentals=int(n_q * n_k + n_q * f_out_p),
        bytes_accessed=int(n_q * n_k                       # adj (int8)
                           + grid[0] * n_k * (f_out_p * 2 + 4)   # Wh|1, e2 per row tile
                           + n_q * 4 + n_q * f_out_p * 4))       # e1, output

    out_p = pl.pallas_call(
        _gat_kernel,
        out_shape=jax.ShapeDtypeStruct((n_q, f_out_p), jnp.float32),
        grid_spec=pltpu.PrefetchScalarGridSpec(
            num_scalar_prefetch=0,
            grid=grid,
            in_specs=[
                pl.BlockSpec((tq, 1), lambda i, k: (i, 0)),        # e1 (query logit term)
                pl.BlockSpec((1, tk), lambda i, k: (0, k)),        # e2 (key logit term)
                pl.BlockSpec((tq, tk), lambda i, k: (i, k)),       # adj tile (int8)
                pl.BlockSpec((tk, f_out_p), lambda i, k: (k, 0)),  # [Wh | ones] (bf16)
            ],
            out_specs=pl.BlockSpec((tq, f_out_p), lambda i, k: (i, 0)),
            scratch_shapes=[
                pltpu.VMEM((tq, 1), jnp.float32),          # running max
                pltpu.VMEM((tq, f_out_p), jnp.float32),    # accumulator (last col = sum)
            ]),
        compiler_params=pltpu.CompilerParams(
            dimension_semantics=("parallel", "arbitrary"),
            vmem_limit_bytes=vmem_limit),
        cost_estimate=cost,
    )(e1_p, e2_p, adj_i8, whk)

    return out_p[:N, :f_out]


# ----------------------------- references ------------------------------------
def gat_reference_f32(h, adj, W, a):
    """Faithful f32 port of the PyTorch module (dropout identity in eval mode)."""
    f_out = W.shape[1]
    Wh = h @ W
    e = Wh @ a[:f_out, :] + (Wh @ a[f_out:, :]).T
    e = jnp.where(e > 0, e, ALPHA * e)
    att = jnp.where(adj > 0, e, NEG_INF)
    att = jax.nn.softmax(att, axis=1)
    hp = att @ Wh
    return jnp.where(hp > 0, hp, jnp.exp(hp) - 1.0) if CONCAT else hp


def gat_reference_mirror(h, adj, W, a):
    """Reference mirroring the kernel's dtype policy (bf16 MXU feeds, f32 math)."""
    n, f_out = h.shape[0], W.shape[1]
    Wh = jnp.dot(h.astype(MXU_DTYPE), W.astype(MXU_DTYPE),
                 preferred_element_type=jnp.float32)
    e = Wh @ a[:f_out, :] + (Wh @ a[f_out:, :]).T
    e = jnp.maximum(e, ALPHA * e)
    masked = jnp.where(adj > 0, e, NEG_INF)
    p = jnp.exp(masked - masked.max(axis=1, keepdims=True))
    pb = p.astype(MXU_DTYPE)
    num = jnp.dot(pb, Wh.astype(MXU_DTYPE), preferred_element_type=jnp.float32)
    den = jnp.dot(pb, jnp.ones((n, 1), MXU_DTYPE), preferred_element_type=jnp.float32)
    hp = num / den
    return jnp.where(hp > 0, hp, jnp.exp(hp) - 1.0) if CONCAT else hp


def xavier_uniform(key, shape, gain):
    fan_in, fan_out = shape
    bound = gain * math.sqrt(6.0 / (fan_in + fan_out))
    return jax.random.uniform(key, shape, jnp.float32, -bound, bound)


def _make_case(key, n, f_in, f_out, p_edge=0.5):
    k_h, k_adj, k_w, k_a = jax.random.split(key, 4)
    W = xavier_uniform(k_w, (f_in, f_out), gain=1.414)   # matches nn.init.xavier_uniform_
    a = xavier_uniform(k_a, (2 * f_out, 1), gain=1.414)
    h = jax.random.normal(k_h, (n, f_in), jnp.float32)
    adj = (jax.random.uniform(k_adj, (n, n)) < p_edge).astype(jnp.float32)
    adj = jnp.maximum(adj, jnp.eye(n, dtype=jnp.float32))   # self loops
    return h, adj, W, a


if __name__ == "__main__":
    key = jax.random.PRNGKey(0)
    k1, k2, k3 = jax.random.split(key, 3)

    gat = jax.jit(gat_forward)

    # (N, F_in, F_out): spec-sized small case, a padded multi-row-tile case, and a case
    # that exercises the online-softmax reduction over several key tiles.
    cases = ((k1, (16, 32, 16)), (k2, (600, 48, 24)), (k3, (1200, 64, 32)))
    for case_key, (n, f_in, f_out) in cases:
        h, adj, W, a = _make_case(case_key, n, f_in, f_out)

        out = gat(h, adj, W, a)
        jax.block_until_ready(out)
        assert out.shape == (n, f_out)

        mirror = gat_reference_mirror(h, adj, W, a)
        ref32 = gat_reference_f32(h, adj, W, a)
        assert jnp.allclose(out, mirror, rtol=2e-2, atol=2e-2), \
            f"kernel vs bf16-mirror reference mismatch at N={n}"
        assert jnp.allclose(out, ref32, rtol=8e-2, atol=8e-2), \
            f"kernel vs f32 reference mismatch at N={n}"

    print("KERNEL_OK")
</pallas_src>

<mosaic_0001>
module attributes {stable_mosaic.version = 11 : i64} {
  func.func @_gat_kernel(%arg0: i32, %arg1: i32, %arg2: memref<32x1xf32, #tpu.memory_space<vmem>>, %arg3: memref<1x128xf32, #tpu.memory_space<vmem>>, %arg4: memref<32x128xi8, #tpu.memory_space<vmem>>, %arg5: memref<128x128xbf16, #tpu.memory_space<vmem>>, %arg6: memref<32x128xf32, #tpu.memory_space<vmem>>, %arg7: memref<32x1xf32, #tpu.memory_space<vmem>>, %arg8: memref<32x128xf32, #tpu.memory_space<vmem>>) attributes {dimension_semantics = [#tpu.dimension_semantics<parallel>, #tpu.dimension_semantics<arbitrary>], iteration_bounds = array<i64: 1, 1>, scalar_prefetch = 0 : i64, scratch_operands = 2 : i64, tpu.core_type = #tpu.core_type<tc>, window_params = [{transform_indices = @transform_0, window_bounds = array<i64: 32, 1>}, {transform_indices = @transform_1, window_bounds = array<i64: 1, 128>}, {transform_indices = @transform_2, window_bounds = array<i64: 32, 128>}, {transform_indices = @transform_3, window_bounds = array<i64: 128, 128>}, {transform_indices = @transform_4, window_bounds = array<i64: 32, 128>}]} {
    %c0_i32 = arith.constant 0 : i32
    %0 = arith.cmpi eq, %arg1, %c0_i32 : i32
    %1 = arith.extui %0 : i1 to i32
    %c0_i32_0 = arith.constant 0 : i32
    %2 = arith.cmpi ne, %1, %c0_i32_0 : i32
    scf.if %2 {
      %cst_22 = arith.constant 0xFF800000 : f32
      %38 = vector.broadcast %cst_22 : f32 to vector<32x1xf32>
      %c0_23 = arith.constant 0 : index
      %c0_24 = arith.constant 0 : index
      %39 = vector.load %arg7[%c0_23, %c0_24] : memref<32x1xf32, #tpu.memory_space<vmem>>, vector<32x1xf32>
      tpu.vector_store %arg7[%c0_23, %c0_24], %38 {strides = array<i32>} : memref<32x1xf32, #tpu.memory_space<vmem>>, vector<32x1xf32>,
      %cst_25 = arith.constant 0.000000e+00 : f32
      %40 = vector.broadcast %cst_25 : f32 to vector<32x128xf32>
      %c0_26 = arith.constant 0 : index
      %c0_27 = arith.constant 0 : index
      %41 = vector.load %arg8[%c0_26, %c0_27] : memref<32x128xf32, #tpu.memory_space<vmem>>, vector<32x128xf32>
      tpu.vector_store %arg8[%c0_26, %c0_27], %40 {strides = array<i32>} : memref<32x128xf32, #tpu.memory_space<vmem>>, vector<32x128xf32>,
    } else {
    }
    %c0 = arith.constant 0 : index
    %c0_1 = arith.constant 0 : index
    %3 = vector.load %arg2[%c0, %c0_1] : memref<32x1xf32, #tpu.memory_space<vmem>>, vector<32x1xf32>
    %c0_2 = arith.constant 0 : index
    %c0_3 = arith.constant 0 : index
    %4 = vector.load %arg3[%c0_2, %c0_3] : memref<1x128xf32, #tpu.memory_space<vmem>>, vector<1x128xf32>
    %5 = vector.broadcast %3 : vector<32x1xf32> to vector<32x128xf32>
    %6 = vector.broadcast %4 : vector<1x128xf32> to vector<32x128xf32>
    %7 = arith.addf %5, %6 : vector<32x128xf32>
    %cst = arith.constant 2.000000e-01 : f32
    %8 = vector.broadcast %cst : f32 to vector<32x128xf32>
    %9 = arith.mulf %8, %7 : vector<32x128xf32>
    %10 = arith.maximumf %7, %9 : vector<32x128xf32>
    %c0_4 = arith.constant 0 : index
    %c0_5 = arith.constant 0 : index
    %11 = vector.load %arg4[%c0_4, %c0_5] : memref<32x128xi8, #tpu.memory_space<vmem>>, vector<32x128xi8>
    %12 = arith.extsi %11 : vector<32x128xi8> to vector<32x128xi32>
    %c0_i32_6 = arith.constant 0 : i32
    %13 = vector.broadcast %c0_i32_6 : i32 to vector<32x128xi32>
    %14 = arith.cmpi sgt, %12, %13 : vector<32x128xi32>
    %cst_7 = arith.constant -9.000000e+15 : f32
    %15 = vector.broadcast %cst_7 : f32 to vector<32x128xf32>
    %16 = arith.select %14, %10, %15 : vector<32x128xi1>, vector<32x128xf32>
    %c0_8 = arith.constant 0 : index
    %c0_9 = arith.constant 0 : index
    %17 = vector.load %arg7[%c0_8, %c0_9] : memref<32x1xf32, #tpu.memory_space<vmem>>, vector<32x1xf32>
    %cst_10 = arith.constant dense<0xFF800000> : vector<32xf32>
    %18 = vector.multi_reduction <maximumf>, %16, %cst_10 [1] : vector<32x128xf32> to vector<32xf32>
    %19 = vector.shape_cast %18 : vector<32xf32> to vector<32x1xf32>
    %20 = arith.maximumf %17, %19 : vector<32x1xf32>
    %21 = arith.subf %17, %20 : vector<32x1xf32>
    %22 = math.exp %21 : vector<32x1xf32>
    %23 = vector.broadcast %20 : vector<32x1xf32> to vector<32x128xf32>
    %24 = arith.subf %16, %23 : vector<32x128xf32>
    %25 = math.exp %24 : vector<32x128xf32>
    %c0_11 = arith.constant 0 : index
    %c0_12 = arith.constant 0 : index
    %26 = vector.load %arg8[%c0_11, %c0_12] : memref<32x128xf32, #tpu.memory_space<vmem>>, vector<32x128xf32>
    %27 = vector.broadcast %22 : vector<32x1xf32> to vector<32x128xf32>
    %28 = arith.mulf %27, %26 : vector<32x128xf32>
    %29 = arith.truncf %25 : vector<32x128xf32> to vector<32x128xbf16>
    %c0_13 = arith.constant 0 : index
    %c0_14 = arith.constant 0 : index
    %30 = vector.load %arg5[%c0_13, %c0_14] : memref<128x128xbf16, #tpu.memory_space<vmem>>, vector<128x128xbf16>
    %cst_15 = arith.constant dense<0.000000e+00> : vector<32x128xf32>
    %31 = tpu.matmul %29, %30, %cst_15 {dimension_numbers = #tpu.dot_dimension_numbers<[1], [0], [0], [1], [0, 0, 1, 1], [], []>} : vector<32x128xbf16>, vector<128x128xbf16>, vector<32x128xf32> -> vector<32x128xf32>
    %32 = arith.addf %28, %31 : vector<32x128xf32>
    %c0_16 = arith.constant 0 : index
    %c0_17 = arith.constant 0 : index
    %33 = vector.load %arg8[%c0_16, %c0_17] : memref<32x128xf32, #tpu.memory_space<vmem>>, vector<32x128xf32>
    tpu.vector_store %arg8[%c0_16, %c0_17], %32 {strides = array<i32>} : memref<32x128xf32, #tpu.memory_space<vmem>>, vector<32x128xf32>,
    %c0_18 = arith.constant 0 : index
    %c0_19 = arith.constant 0 : index
    %34 = vector.load %arg7[%c0_18, %c0_19] : memref<32x1xf32, #tpu.memory_space<vmem>>, vector<32x1xf32>
    tpu.vector_store %arg7[%c0_18, %c0_19], %20 {strides = array<i32>} : memref<32x1xf32, #tpu.memory_space<vmem>>, vector<32x1xf32>,
    %c0_i32_20 = arith.constant 0 : i32
    %35 = arith.cmpi eq, %arg1, %c0_i32_20 : i32
    %36 = arith.extui %35 : i1 to i32
    %c0_i32_21 = arith.constant 0 : i32
    %37 = arith.cmpi ne, %36, %c0_i32_21 : i32
    scf.if %37 {
      %c0_22 = arith.constant 0 : index
      %c0_23 = arith.constant 0 : index
      %38 = vector.load %arg8[%c0_22, %c0_23] : memref<32x128xf32, #tpu.memory_space<vmem>>, vector<32x128xf32>
      %39 = vector.extract_strided_slice %38 {offsets = [0, 127], sizes = [32, 1], strides = [1, 1]} : vector<32x128xf32> to vector<32x1xf32>
      %40 = tpu.reciprocal %39 : vector<32x1xf32> -> vector<32x1xf32>
      %41 = vector.broadcast %40 : vector<32x1xf32> to vector<32x128xf32>
      %42 = arith.mulf %38, %41 : vector<32x128xf32>
      %cst_24 = arith.constant 0.000000e+00 : f32
      %43 = vector.broadcast %cst_24 : f32 to vector<32x128xf32>
      %44 = arith.cmpf ogt, %42, %43 : vector<32x128xf32>
      %45 = math.exp %42 : vector<32x128xf32>
      %cst_25 = arith.constant 1.000000e+00 : f32
      %46 = vector.broadcast %cst_25 : f32 to vector<32x128xf32>
      %47 = arith.subf %45, %46 : vector<32x128xf32>
      %48 = arith.select %44, %42, %47 : vector<32x128xi1>, vector<32x128xf32>
      %c0_26 = arith.constant 0 : index
      %c0_27 = arith.constant 0 : index
      %49 = vector.load %arg6[%c0_26, %c0_27] : memref<32x128xf32, #tpu.memory_space<vmem>>, vector<32x128xf32>
      tpu.vector_store %arg6[%c0_26, %c0_27], %48 {strides = array<i32>} : memref<32x128xf32, #tpu.memory_space<vmem>>, vector<32x128xf32>,
    } else {
    }
    return
  }
  func.func @transform_0(%arg0: i32, %arg1: i32) -> (i32, i32) {
    %c0_i32 = arith.constant 0 : i32
    %c0_i32_0 = arith.constant 0 : i32
    return %arg0, %c0_i32 : i32, i32
  }
  func.func @transform_1(%arg0: i32, %arg1: i32) -> (i32, i32) {
    %c0_i32 = arith.constant 0 : i32
    %c0_i32_0 = arith.constant 0 : i32
    return %c0_i32, %arg1 : i32, i32
  }
  func.func @transform_2(%arg0: i32, %arg1: i32) -> (i32, i32) {
    %c0_i32 = arith.constant 0 : i32
    return %arg0, %arg1 : i32, i32
  }
  func.func @transform_3(%arg0: i32, %arg1: i32) -> (i32, i32) {
    %c0_i32 = arith.constant 0 : i32
    %c0_i32_0 = arith.constant 0 : i32
    return %arg1, %c0_i32 : i32, i32
  }
  func.func @transform_4(%arg0: i32, %arg1: i32) -> (i32, i32) {
    %c0_i32 = arith.constant 0 : i32
    %c0_i32_0 = arith.constant 0 : i32
    return %arg0, %c0_i32 : i32, i32
  }
}

</mosaic_0001>

<llo_original>
// kernel: gat_forward.1
$region0: #{gat_forward.1}
  #allocation0 [shape = 'u32[]', space=smem, size = 0x4, offset = 0x4, fixed_abs, tag = 'smem constant byte address 0x4 - core index']
  #allocation1 [shape = 'u32[144,128]{1,0:T(1,128)}', space=vmem, size = 0x12000, scoped, tag = 'internal scratch']
  #allocation2 [shape = 'f32[32,1]{1,0:T(8,128)}', space=vmem, size = 0x4000, scoped, tag = 'scratch operand']
  #allocation3 [shape = 'f32[32,128]{1,0:T(8,128)}', space=vmem, size = 0x4000, scoped, tag = 'scratch operand']
  %s0 = inlined_call_operand.vmem [shape: f32[32,1], index: 0, kind: input, shape index: {}]
  %s1 = inlined_call_operand.vmem [shape: f32[1,128], index: 1, kind: input, shape index: {}]
  %s2 = inlined_call_operand.vmem [shape: s8[32,128], index: 2, kind: input, shape index: {}]
  %s3 = inlined_call_operand.vmem [shape: bf16[128,128], index: 3, kind: input, shape index: {}]
  %s4 = inlined_call_operand.vmem [shape: f32[32,128], index: 4, kind: output, shape index: {}]
  %s5 = sld [smem:[#allocation0]]
  $region34: #{gat_forward.1} parent=0
    _
  %s7 = ssub.s32 1, %s5
  %s8 = scalar_select 0, %s7, %s5
  // Predicated region
  $region2: #{gat_forward.1} parent=0 // pred_check
    _
  $region3: #{gat_forward.1} parent=0 // pred_check_branch
    %10 = sbr.rel (0) target = $region5
  $region4: #{gat_forward.1} parent=0 // pred_region
    _
  $region5: #{gat_forward.1} parent=0 // pred_fallthru
    _
  // Predicated region
  $region6: #{gat_forward.1} parent=0 // pred_check
    _
  $region7: #{gat_forward.1} parent=0 // pred_check_branch
    %12 = sbr.rel (0) target = $region9
  $region8: #{gat_forward.1} parent=0 // pred_region
    _
  $region9: #{gat_forward.1} parent=0 // pred_fallthru
    _
  // Predicated region
  $region10: #{gat_forward.1} parent=0 // pred_check
    _
  $region11: #{gat_forward.1} parent=0 // pred_check_branch
    %14 = sbr.rel (0) target = $region13
  $region12: #{gat_forward.1} parent=0 // pred_region
    _
  $region13: #{gat_forward.1} parent=0 // pred_fallthru
    _
  // Predicated region
  $region14: #{gat_forward.1} parent=0 // pred_check
    _
  $region15: #{gat_forward.1} parent=0 // pred_check_branch
    %16 = sbr.rel (0) target = $region17
  $region16: #{gat_forward.1} parent=0 // pred_region
    _
  $region17: #{gat_forward.1} parent=0 // pred_fallthru
    _
  %p18 = scmp.eq.s32.totalorder 0, 0
  // Predicated region
  $region18: #{gat_forward.1} parent=0 // pred_check
    %p19 = pneg %p18
  $region19: #{gat_forward.1} parent=0 // pred_check_branch
    %21 = sbr.rel (%p19) target = $region21
  $region20: #{gat_forward.1} parent=0 // pred_region
    %vm22 = vcmask 7168
    %23 = vst.msk [vmem:[#allocation2] sm:$0xff] %vm22, -inf
    %24 = vst.msk [vmem:[#allocation2 + $0x8] sm:$0xff] %vm22, -inf
    %25 = vst.msk [vmem:[#allocation2 + $0x10] sm:$0xff] %vm22, -inf
    %26 = vst.msk [vmem:[#allocation2 + $0x18] sm:$0xff] %vm22, -inf
    %27 = vst [vmem:[#allocation3] sm:$0xff] 0.0
    %28 = vst [vmem:[#allocation3 + $0x8] sm:$0xff] 0.0
    %29 = vst [vmem:[#allocation3 + $0x10] sm:$0xff] 0.0
    %30 = vst [vmem:[#allocation3 + $0x18] sm:$0xff] 0.0
  $region21: #{gat_forward.1} parent=0 // pred_fallthru
    _
  %v31 = vld [vmem:[%s0] sm:$0xff]
  %v32 = vld [vmem:[%s0 + $0x8] sm:$0xff]
  %v33 = vld [vmem:[%s0 + $0x10] sm:$0xff]
  %v34 = vld [vmem:[%s0 + $0x18] sm:$0xff]
  %v35 = vld [vmem:[%s1] sm:$0x1]
  %37 = vset.pattern.permute.xlu0 0
  %38 = vperm.xlu0 %37, %v31
  %v39 = vpop.permute.xlu0 %38
  %42 = vset.pattern.permute.xlu0 0
  %43 = vperm.xlu0 %42, %v32
  %v44 = vpop.permute.xlu0 %43
  %47 = vset.pattern.permute.xlu0 0
  %48 = vperm.xlu0 %47, %v33
  %v49 = vpop.permute.xlu0 %48
  %52 = vset.pattern.permute.xlu0 0
  %53 = vperm.xlu0 %52, %v34
  %v54 = vpop.permute.xlu0 %53
  %v57 = vlaneseq
  %v58 = vshrl.u32 %v57, 7
  %v59 = vsub.s32 0, %v58
  %v60 = vrot.slane %v35, %v59
  %v62 = vadd.f32 %v39, %v60
  %v63 = vadd.f32 %v44, %v60
  %v64 = vadd.f32 %v49, %v60
  %v65 = vadd.f32 %v54, %v60
  %v66 = vmul.f32 %v62, 0.2
  %v67 = vmul.f32 %v63, 0.2
  %v68 = vmul.f32 %v64, 0.2
  %v69 = vmul.f32 %v65, 0.2
  %v70 = vmax.f32 %v62, %v66
  %v71 = vmax.f32 %v63, %v67
  %v72 = vmax.f32 %v64, %v68
  %v73 = vmax.f32 %v65, %v69
  %v74 = vld [vmem:[%s2] sm:$0xff]
  %v75 = vunpack.c.0.s8 %v74
  %v76 = vunpack.c.1.s8 %v74
  %v77 = vunpack.c.2.s8 %v74
  %v78 = vunpack.c.3.s8 %v74
  %vm79 = vcmp.gt.s32.totalorder %v75, 0
  %vm80 = vcmp.gt.s32.totalorder %v76, 0
  %vm81 = vcmp.gt.s32.totalorder %v77, 0
  %vm82 = vcmp.gt.s32.totalorder %v78, 0
  %v83 = vsel %vm79, %v70, -9e+15
  %v84 = vsel %vm80, %v71, -9e+15
  %v85 = vsel %vm81, %v72, -9e+15
  %v86 = vsel %vm82, %v73, -9e+15
  %v87 = vld [vmem:[#allocation2] sm:$0xff]
  %v88 = vld [vmem:[#allocation2 + $0x8] sm:$0xff]
  %v89 = vld [vmem:[#allocation2 + $0x10] sm:$0xff]
  %v90 = vld [vmem:[#allocation2 + $0x18] sm:$0xff]
  %91 = vmax.xlane.f32.xlu0 %v83
  %v92 = vpop.xlane.xlu0 %91
  %93 = vmax.xlane.f32.xlu0 %v84
  %v94 = vpop.xlane.xlu0 %93
  %95 = vmax.xlane.f32.xlu0 %v85
  %v96 = vpop.xlane.xlu0 %95
  %97 = vmax.xlane.f32.xlu0 %v86
  %v98 = vpop.xlane.xlu0 %97
  %v99 = vmax.f32 %v87, %v92
  %v100 = vmax.f32 %v88, %v94
  %v101 = vmax.f32 %v89, %v96
  %v102 = vmax.f32 %v90, %v98
  %v103 = vsub.f32 %v87, %v99
  %v104 = vsub.f32 %v88, %v100
  %v105 = vsub.f32 %v89, %v101
  %v106 = vsub.f32 %v90, %v102
  %v107 = vmul.f32 %v103, 1.442695
  %v108 = vpow.pop %v107
  %v109 = vmul.f32 %v104, 1.442695
  %v110 = vpow.pop %v109
  %v111 = vmul.f32 %v105, 1.442695
  %v112 = vpow.pop %v111
  %v113 = vmul.f32 %v106, 1.442695
  %v114 = vpow.pop %v113
  %116 = vset.pattern.permute.xlu0 0
  %117 = vperm.xlu0 %116, %v99
  %v118 = vpop.permute.xlu0 %117
  %121 = vset.pattern.permute.xlu0 0
  %122 = vperm.xlu0 %121, %v100
  %v123 = vpop.permute.xlu0 %122
  %126 = vset.pattern.permute.xlu0 0
  %127 = vperm.xlu0 %126, %v101
  %v128 = vpop.permute.xlu0 %127
  %131 = vset.pattern.permute.xlu0 0
  %132 = vperm.xlu0 %131, %v102
  %v133 = vpop.permute.xlu0 %132
  %v135 = vsub.f32 %v83, %v118
  %v136 = vsub.f32 %v84, %v123
  %v137 = vsub.f32 %v85, %v128
  %v138 = vsub.f32 %v86, %v133
  %v139 = vmul.f32 %v135, 1.442695
  %v140 = vpow.pop %v139
  %v141 = vmul.f32 %v136, 1.442695
  %v142 = vpow.pop %v141
  %v143 = vmul.f32 %v137, 1.442695
  %v144 = vpow.pop %v143
  %v145 = vmul.f32 %v138, 1.442695
  %v146 = vpow.pop %v145
  %v147 = vld [vmem:[#allocation3] sm:$0xff]
  %v148 = vld [vmem:[#allocation3 + $0x8] sm:$0xff]
  %v149 = vld [vmem:[#allocation3 + $0x10] sm:$0xff]
  %v150 = vld [vmem:[#allocation3 + $0x18] sm:$0xff]
  %152 = vset.pattern.permute.xlu0 0
  %153 = vperm.xlu0 %152, %v108
  %v154 = vpop.permute.xlu0 %153
  %157 = vset.pattern.permute.xlu0 0
  %158 = vperm.xlu0 %157, %v110
  %v159 = vpop.permute.xlu0 %158
  %162 = vset.pattern.permute.xlu0 0
  %163 = vperm.xlu0 %162, %v112
  %v164 = vpop.permute.xlu0 %163
  %167 = vset.pattern.permute.xlu0 0
  %168 = vperm.xlu0 %167, %v114
  %v169 = vpop.permute.xlu0 %168
  %v171 = vmul.f32 %v154, %v147
  %v172 = vmul.f32 %v159, %v148
  %v173 = vmul.f32 %v164, %v149
  %v174 = vmul.f32 %v169, %v150
  %v175 = vpack.c.bf16 %v142, %v140
  %v176 = vpack.c.bf16 %v146, %v144
  %v177 = vld [vmem:[%s3] sm:$0xf]
  %v178 = vld [vmem:[%s3 + $0x4] sm:$0xf]
  %v179 = vld [vmem:[%s3 + $0x8] sm:$0xf]
  %v180 = vld [vmem:[%s3 + $0xc] sm:$0xf]
  %v181 = vld [vmem:[%s3 + $0x10] sm:$0xf]
  %v182 = vld [vmem:[%s3 + $0x14] sm:$0xf]
  %v183 = vld [vmem:[%s3 + $0x18] sm:$0xf]
  %v184 = vld [vmem:[%s3 + $0x1c] sm:$0xf]
  %v185 = vld [vmem:[%s3 + $0x20] sm:$0xf]
  %v186 = vld [vmem:[%s3 + $0x24] sm:$0xf]
  %v187 = vld [vmem:[%s3 + $0x28] sm:$0xf]
  %v188 = vld [vmem:[%s3 + $0x2c] sm:$0xf]
  %v189 = vld [vmem:[%s3 + $0x30] sm:$0xf]
  %v190 = vld [vmem:[%s3 + $0x34] sm:$0xf]
  %v191 = vld [vmem:[%s3 + $0x38] sm:$0xf]
  %v192 = vld [vmem:[%s3 + $0x3c] sm:$0xf]
  %v209 = vunpack.c.l.b16 %v177
  %v210 = vunpack.c.l.b16 %v178
  %v211 = vunpack.c.l.b16 %v179
  %v212 = vunpack.c.l.b16 %v180
  %v213 = vunpack.c.l.b16 %v181
  %v214 = vunpack.c.l.b16 %v182
  %v215 = vunpack.c.l.b16 %v183
  %v216 = vunpack.c.l.b16 %v184
  %v217 = vunpack.c.l.b16 %v185
  %v218 = vunpack.c.l.b16 %v186
  %v219 = vunpack.c.l.b16 %v187
  %v220 = vunpack.c.l.b16 %v188
  %v221 = vunpack.c.l.b16 %v189
  %v222 = vunpack.c.l.b16 %v190
  %v223 = vunpack.c.l.b16 %v191
  %v224 = vunpack.c.l.b16 %v192
  %v225 = vpack.c.b16 %v210, %v209
  %v226 = vpack.c.b16 %v212, %v211
  %v227 = vpack.c.b16 %v214, %v213
  %v228 = vpack.c.b16 %v216, %v215
  %v229 = vpack.c.b16 %v218, %v217
  %v230 = vpack.c.b16 %v220, %v219
  %v231 = vpack.c.b16 %v222, %v221
  %v232 = vpack.c.b16 %v224, %v223
  %241 = vmatprep.subr.bf16.mxu0 0
  %242 = vmatpush1.bf16.msra.mxu0 %v225
  %243 = vmatprep.subr.bf16.mxu0 0
  %244 = vmatpush1.bf16.msra.mxu0 %v226
  %245 = vmatprep.subr.bf16.mxu0 0
  %246 = vmatpush1.bf16.msra.mxu0 %v227
  %247 = vmatprep.subr.bf16.mxu0 0
  %248 = vmatpush1.bf16.msra.mxu0 %v228
  %249 = vmatprep.subr.bf16.mxu0 0
  %250 = vmatpush1.bf16.msra.mxu0 %v229
  %251 = vmatprep.subr.bf16.mxu0 0
  %252 = vmatpush1.bf16.msra.mxu0 %v230
  %253 = vmatprep.subr.bf16.mxu0 0
  %254 = vmatpush1.bf16.msra.mxu0 %v231
  %255 = vmatprep.subr.bf16.mxu0 0
  %256 = vmatpush1.bf16.msra.mxu0 %v232
  %257 = vmatprep.subr.bf16.mxu0 0
  %258 = vmatpush1.bf16.msra.mxu0 0
  %259 = vmatprep.subr.bf16.mxu0 0
  %260 = vmatpush1.bf16.msra.mxu0 0
  %261 = vmatprep.subr.bf16.mxu0 0
  %262 = vmatpush1.bf16.msra.mxu0 0
  %263 = vmatprep.subr.bf16.mxu0 0
  %264 = vmatpush1.bf16.msra.mxu0 0
  %265 = vmatprep.subr.bf16.mxu0 0
  %266 = vmatpush1.bf16.msra.mxu0 0
  %267 = vmatprep.subr.bf16.mxu0 0
  %268 = vmatpush1.bf16.msra.mxu0 0
  %269 = vmatprep.subr.bf16.mxu0 0
  %270 = vmatpush1.bf16.msra.mxu0 0
  %271 = vmatprep.subr.bf16.mxu0 0
  %272 = vmatpush1.bf16.msra.mxu0 0
  %273 = vmatprep.mubr.bf16.mxu0 0
  %274 = vmatmul.mubr.bf16.gmra.mrb[0].mxu0 %v175
  %v275 = vpop.f32.mrb[0].mxu0
  %v276 = vadd.f32 0.0, %v275
  %v277 = vpop.f32.mrb[0].mxu0
  %v278 = vpop.f32.mrb[0].mxu0
  %v279 = vadd.f32 0.0, %v278
  %v280 = vpop.f32.mrb[0].mxu0
  %281 = vmatprep.mubr.bf16.mxu0 0
  %282 = vmatmul.mubr.bf16.gmra.mrb[0].mxu0 %v176
  %v283 = vpop.f32.mrb[0].mxu0
  %v284 = vadd.f32 0.0, %v283
  %v285 = vpop.f32.mrb[0].mxu0
  %v286 = vpop.f32.mrb[0].mxu0
  %v287 = vadd.f32 0.0, %v286
  %v288 = vpop.f32.mrb[0].mxu0
  %289 = vdwg.mxu0
  %v290 = vadd.f32 %v171, %v276
  %v291 = vadd.f32 %v172, %v279
  %v292 = vadd.f32 %v173, %v284
  %v293 = vadd.f32 %v174, %v287
  %294 = vst [vmem:[#allocation3] sm:$0xff] %v290
  %295 = vst [vmem:[#allocation3 + $0x8] sm:$0xff] %v291
  %296 = vst [vmem:[#allocation3 + $0x10] sm:$0xff] %v292
  %297 = vst [vmem:[#allocation3 + $0x18] sm:$0xff] %v293
  %vm298 = vcmask 7168
  %299 = vst.msk [vmem:[#allocation2] sm:$0xff] %vm298, %v99
  %300 = vst.msk [vmem:[#allocation2 + $0x8] sm:$0xff] %vm298, %v100
  %301 = vst.msk [vmem:[#allocation2 + $0x10] sm:$0xff] %vm298, %v101
  %302 = vst.msk [vmem:[#allocation2 + $0x18] sm:$0xff] %vm298, %v102
  // Predicated region
  $region22: #{gat_forward.1} parent=0 // pred_check
    %p303 = pneg %p18
  $region23: #{gat_forward.1} parent=0 // pred_check_branch
    %305 = sbr.rel (%p303) target = $region25
  $region24: #{gat_forward.1} parent=0 // pred_region
    %v306 = vld [vmem:[#allocation3] sm:$0xff]
    %v307 = vld [vmem:[#allocation3 + $0x8] sm:$0xff]
    %v308 = vld [vmem:[#allocation3 + $0x10] sm:$0xff]
    %v309 = vld [vmem:[#allocation3 + $0x18] sm:$0xff]
    %v310 = vrcp.pop %v306
    %v311 = vrcp.pop %v307
    %v312 = vrcp.pop %v308
    %v313 = vrcp.pop %v309
    %315 = vset.pattern.permute.xlu0 127
    %316 = vperm.xlu0 %315, %v310
    %v317 = vpop.permute.xlu0 %316
    %320 = vset.pattern.permute.xlu0 127
    %321 = vperm.xlu0 %320, %v311
    %v322 = vpop.permute.xlu0 %321
    %325 = vset.pattern.permute.xlu0 127
    %326 = vperm.xlu0 %325, %v312
    %v327 = vpop.permute.xlu0 %326
    %330 = vset.pattern.permute.xlu0 127
    %331 = vperm.xlu0 %330, %v313
    %v332 = vpop.permute.xlu0 %331
    %v334 = vmul.f32 %v306, %v317
    %v335 = vmul.f32 %v307, %v322
    %v336 = vmul.f32 %v308, %v327
    %v337 = vmul.f32 %v309, %v332
    %vm338 = vcmp.gt.f32.partialorder %v334, 0.0
    %vm339 = vcmp.gt.f32.partialorder %v335, 0.0
    %vm340 = vcmp.gt.f32.partialorder %v336, 0.0
    %vm341 = vcmp.gt.f32.partialorder %v337, 0.0
    %v342 = vmul.f32 %v334, 1.442695
    %v343 = vpow.pop %v342
    %v344 = vmul.f32 %v335, 1.442695
    %v345 = vpow.pop %v344
    %v346 = vmul.f32 %v336, 1.442695
    %v347 = vpow.pop %v346
    %v348 = vmul.f32 %v337, 1.442695
    %v349 = vpow.pop %v348
    %v350 = vsub.f32 %v343, 1.0
    %v351 = vsub.f32 %v345, 1.0
    %v352 = vsub.f32 %v347, 1.0
    %v353 = vsub.f32 %v349, 1.0
    %v354 = vsel %vm338, %v334, %v350
    %v355 = vsel %vm339, %v335, %v351
    %v356 = vsel %vm340, %v336, %v352
    %v357 = vsel %vm341, %v337, %v353
    %358 = vst [vmem:[%s4] sm:$0xff] %v354
    %359 = vst [vmem:[%s4 + $0x8] sm:$0xff] %v355
    %360 = vst [vmem:[%s4 + $0x10] sm:$0xff] %v356
    %361 = vst [vmem:[%s4 + $0x18] sm:$0xff] %v357
  $region25: #{gat_forward.1} parent=0 // pred_fallthru
    _
  // Predicated region
  $region26: #{gat_forward.1} parent=0 // pred_check
    _
  $region27: #{gat_forward.1} parent=0 // pred_check_branch
    %363 = sbr.rel (0) target = $region29
  $region28: #{gat_forward.1} parent=0 // pred_region
    _
  $region29: #{gat_forward.1} parent=0 // pred_fallthru
    _
  // Predicated region
  $region30: #{gat_forward.1} parent=0 // pred_check
    _
  $region31: #{gat_forward.1} parent=0 // pred_check_branch
    %365 = sbr.rel (0) target = $region33
  $region32: #{gat_forward.1} parent=0 // pred_region
    _
  $region33: #{gat_forward.1} parent=0 // pred_fallthru
    _

</llo_original>
